<compile_context>
chip_gen: v7x
topology: tpu7x:2x2x1
jax: 0.10.0
libtpu: 0.0.40
codegen_flags: <defaults>
</compile_context>

<pallas_src>
import functools

import jax
import jax.numpy as jnp
from jax.experimental import pallas as pl
from jax.experimental.pallas import tpu as pltpu


def _round_up(n: int, m: int) -> int:
    return ((n + m - 1) // m) * m


def _tsp_kernel(x_ref, mean_ref, var_ref, acc_sum, acc_sq, *, n_frames: int):
    """Streaming one-pass mean/var reduction over the frames grid axis."""
    t = pl.program_id(1)

    @pl.when(t == 0)
    def _init():
        acc_sum[...] = jnp.zeros_like(acc_sum)
        acc_sq[...] = jnp.zeros_like(acc_sq)

    # (TB, TT, C) frame tile; cast once to f32 and reuse for both moments.
    x = x_ref[...].astype(jnp.float32)
    acc_sum[...] += jnp.sum(x, axis=1)
    acc_sq[...] += jnp.sum(x * x, axis=1)

    @pl.when(t == pl.num_programs(1) - 1)
    def _finalize():
        s = acc_sum[...]
        mean = s * jnp.float32(1.0 / n_frames)
        # Unbiased variance (ddof=1), accumulated in f32 to keep the
        # sumsq - sum*mean cancellation numerically safe.
        var = (acc_sq[...] - s * mean) / jnp.float32(n_frames - 1)
        mean_ref[...] = mean.astype(mean_ref.dtype)
        var_ref[...] = var.astype(var_ref.dtype)


def temporal_statistics_pooling(
    x: jax.Array, *, block_bytes: int = 4 * 1024 * 1024
) -> jax.Array:
    """TSP forward: x (B, T, C) -> (B, 2*C) = concat(mean_t, var_t)."""
    B, T, C = x.shape
    itemsize = jnp.dtype(x.dtype).itemsize

    # ---- tile sizing -----------------------------------------------------
    # Batch tile: whole batch if small, else 8 (keeps the (8,128) rule happy).
    TB = B if B <= 8 else 8
    # Frame tile: multiple of 8, sized so one input block <= block_bytes
    # (the pipeline double-buffers it, so ~2x that is resident).
    row_bytes = max(TB * C * itemsize, 1)
    TT = max(8, (block_bytes // row_bytes) // 8 * 8)
    TT = min(TT, _round_up(T, 8))

    B_pad = _round_up(B, TB)
    T_pad = _round_up(T, TT)

    # Zero padding is safe: padded frames/rows contribute 0 to both
    # accumulators, and the finalize step divides by the true T.
    if (B_pad, T_pad) != (B, T):
        x = jnp.pad(x, ((0, B_pad - B), (0, T_pad - T), (0, 0)))

    grid = (B_pad // TB, T_pad // TT)
    kernel = functools.partial(_tsp_kernel, n_frames=T)

    mean, var = pl.pallas_call(
        kernel,
        out_shape=(
            jax.ShapeDtypeStruct((B_pad, C), x.dtype),
            jax.ShapeDtypeStruct((B_pad, C), x.dtype),
        ),
        grid_spec=pltpu.PrefetchScalarGridSpec(
            num_scalar_prefetch=0,
            grid=grid,
            in_specs=[pl.BlockSpec((TB, TT, C), lambda b, t: (b, t, 0))],
            out_specs=(
                pl.BlockSpec((TB, C), lambda b, t: (b, 0)),
                pl.BlockSpec((TB, C), lambda b, t: (b, 0)),
            ),
            scratch_shapes=[
                pltpu.VMEM((TB, C), jnp.float32),
                pltpu.VMEM((TB, C), jnp.float32),
            ],
        ),
        compiler_params=pltpu.CompilerParams(
            # batch axis parallel (megacore on v7x), frames axis is a reduction.
            dimension_semantics=("parallel", "arbitrary"),
            # <=4 MiB blocks double-buffered + outputs + scratch fits easily;
            # explicit limit with headroom, safe on v5e/v6e/v7x.
            vmem_limit_bytes=32 * 1024 * 1024,
        ),
    )(x)

    # Lane-dense kernel outputs; the (B, 2C) concat is free layout plumbing.
    return jnp.concatenate([mean[:B], var[:B]], axis=1)


def _reference(x: jax.Array) -> jax.Array:
    mean = jnp.mean(x, axis=1)
    var = jnp.var(x, axis=1, ddof=1)  # unbiased, like torch.var default
    return jnp.concatenate([mean, var], axis=1)


if __name__ == "__main__":
    key = jax.random.PRNGKey(0)
    B, T, C = 2, 16, 8  # (#batch, frames, channels)
    x = jax.random.normal(key, (B, T, C), dtype=jnp.float32)

    out = jax.block_until_ready(temporal_statistics_pooling(x))
    ref = _reference(x)

    assert out.shape == (B, 2 * C), f"bad output shape: {out.shape}"
    assert jnp.allclose(out, ref, atol=1e-5, rtol=1e-5), "mismatch vs reference"

    print("KERNEL_OK")
</pallas_src>

<mosaic_0001>
module attributes {stable_mosaic.version = 11 : i64} {
  func.func @_tsp_kernel(%arg0: i32, %arg1: i32, %arg2: memref<2x16x8xf32, #tpu.memory_space<vmem>>, %arg3: memref<2x8xf32, #tpu.memory_space<vmem>>, %arg4: memref<2x8xf32, #tpu.memory_space<vmem>>, %arg5: memref<2x8xf32, #tpu.memory_space<vmem>>, %arg6: memref<2x8xf32, #tpu.memory_space<vmem>>) attributes {dimension_semantics = [#tpu.dimension_semantics<parallel>, #tpu.dimension_semantics<arbitrary>], iteration_bounds = array<i64: 1, 1>, scalar_prefetch = 0 : i64, scratch_operands = 2 : i64, tpu.core_type = #tpu.core_type<tc>, window_params = [{transform_indices = @transform_0, window_bounds = array<i64: 2, 16, 8>}, {transform_indices = @transform_1, window_bounds = array<i64: 2, 8>}, {transform_indices = @transform_2, window_bounds = array<i64: 2, 8>}]} {
    %c0_i32 = arith.constant 0 : i32
    %0 = arith.cmpi eq, %arg1, %c0_i32 : i32
    %1 = arith.extui %0 : i1 to i32
    %c0_i32_0 = arith.constant 0 : i32
    %2 = arith.cmpi ne, %1, %c0_i32_0 : i32
    scf.if %2 {
      %cst_14 = arith.constant 0.000000e+00 : f32
      %16 = vector.broadcast %cst_14 : f32 to vector<2x8xf32>
      %c0_15 = arith.constant 0 : index
      %c0_16 = arith.constant 0 : index
      %17 = vector.load %arg5[%c0_15, %c0_16] : memref<2x8xf32, #tpu.memory_space<vmem>>, vector<2x8xf32>
      tpu.vector_store %arg5[%c0_15, %c0_16], %16 {strides = array<i32>} : memref<2x8xf32, #tpu.memory_space<vmem>>, vector<2x8xf32>,
      %cst_17 = arith.constant 0.000000e+00 : f32
      %18 = vector.broadcast %cst_17 : f32 to vector<2x8xf32>
      %c0_18 = arith.constant 0 : index
      %c0_19 = arith.constant 0 : index
      %19 = vector.load %arg6[%c0_18, %c0_19] : memref<2x8xf32, #tpu.memory_space<vmem>>, vector<2x8xf32>
      tpu.vector_store %arg6[%c0_18, %c0_19], %18 {strides = array<i32>} : memref<2x8xf32, #tpu.memory_space<vmem>>, vector<2x8xf32>,
    } else {
    }
    %c0 = arith.constant 0 : index
    %c0_1 = arith.constant 0 : index
    %c0_2 = arith.constant 0 : index
    %3 = vector.load %arg2[%c0, %c0_1, %c0_2] : memref<2x16x8xf32, #tpu.memory_space<vmem>>, vector<2x16x8xf32>
    %c0_3 = arith.constant 0 : index
    %c0_4 = arith.constant 0 : index
    %4 = vector.load %arg5[%c0_3, %c0_4] : memref<2x8xf32, #tpu.memory_space<vmem>>, vector<2x8xf32>
    %cst = arith.constant dense<0.000000e+00> : vector<2x8xf32>
    %5 = vector.multi_reduction <add>, %3, %cst [1] : vector<2x16x8xf32> to vector<2x8xf32>
    %6 = arith.addf %4, %5 : vector<2x8xf32>
    %c0_5 = arith.constant 0 : index
    %c0_6 = arith.constant 0 : index
    %7 = vector.load %arg5[%c0_5, %c0_6] : memref<2x8xf32, #tpu.memory_space<vmem>>, vector<2x8xf32>
    tpu.vector_store %arg5[%c0_5, %c0_6], %6 {strides = array<i32>} : memref<2x8xf32, #tpu.memory_space<vmem>>, vector<2x8xf32>,
    %c0_7 = arith.constant 0 : index
    %c0_8 = arith.constant 0 : index
    %8 = vector.load %arg6[%c0_7, %c0_8] : memref<2x8xf32, #tpu.memory_space<vmem>>, vector<2x8xf32>
    %9 = arith.mulf %3, %3 : vector<2x16x8xf32>
    %cst_9 = arith.constant dense<0.000000e+00> : vector<2x8xf32>
    %10 = vector.multi_reduction <add>, %9, %cst_9 [1] : vector<2x16x8xf32> to vector<2x8xf32>
    %11 = arith.addf %8, %10 : vector<2x8xf32>
    %c0_10 = arith.constant 0 : index
    %c0_11 = arith.constant 0 : index
    %12 = vector.load %arg6[%c0_10, %c0_11] : memref<2x8xf32, #tpu.memory_space<vmem>>, vector<2x8xf32>
    tpu.vector_store %arg6[%c0_10, %c0_11], %11 {strides = array<i32>} : memref<2x8xf32, #tpu.memory_space<vmem>>, vector<2x8xf32>,
    %c0_i32_12 = arith.constant 0 : i32
    %13 = arith.cmpi eq, %arg1, %c0_i32_12 : i32
    %14 = arith.extui %13 : i1 to i32
    %c0_i32_13 = arith.constant 0 : i32
    %15 = arith.cmpi ne, %14, %c0_i32_13 : i32
    scf.if %15 {
      %c0_14 = arith.constant 0 : index
      %c0_15 = arith.constant 0 : index
      %16 = vector.load %arg5[%c0_14, %c0_15] : memref<2x8xf32, #tpu.memory_space<vmem>>, vector<2x8xf32>
      %cst_16 = arith.constant 6.250000e-02 : f32
      %17 = vector.broadcast %cst_16 : f32 to vector<2x8xf32>
      %18 = arith.mulf %16, %17 : vector<2x8xf32>
      %c0_17 = arith.constant 0 : index
      %c0_18 = arith.constant 0 : index
      %19 = vector.load %arg6[%c0_17, %c0_18] : memref<2x8xf32, #tpu.memory_space<vmem>>, vector<2x8xf32>
      %20 = arith.mulf %16, %18 : vector<2x8xf32>
      %21 = arith.subf %19, %20 : vector<2x8xf32>
      %cst_19 = arith.constant 1.500000e+01 : f32
      %22 = vector.broadcast %cst_19 : f32 to vector<2x8xf32>
      %23 = arith.divf %21, %22 : vector<2x8xf32>
      %c0_20 = arith.constant 0 : index
      %c0_21 = arith.constant 0 : index
      %24 = vector.load %arg3[%c0_20, %c0_21] : memref<2x8xf32, #tpu.memory_space<vmem>>, vector<2x8xf32>
      tpu.vector_store %arg3[%c0_20, %c0_21], %18 {strides = array<i32>} : memref<2x8xf32, #tpu.memory_space<vmem>>, vector<2x8xf32>,
      %c0_22 = arith.constant 0 : index
      %c0_23 = arith.constant 0 : index
      %25 = vector.load %arg4[%c0_22, %c0_23] : memref<2x8xf32, #tpu.memory_space<vmem>>, vector<2x8xf32>
      tpu.vector_store %arg4[%c0_22, %c0_23], %23 {strides = array<i32>} : memref<2x8xf32, #tpu.memory_space<vmem>>, vector<2x8xf32>,
    } else {
    }
    return
  }
  func.func @transform_0(%arg0: i32, %arg1: i32) -> (i32, i32, i32) {
    %c0_i32 = arith.constant 0 : i32
    %c0_i32_0 = arith.constant 0 : i32
    return %arg0, %arg1, %c0_i32 : i32, i32, i32
  }
  func.func @transform_1(%arg0: i32, %arg1: i32) -> (i32, i32) {
    %c0_i32 = arith.constant 0 : i32
    %c0_i32_0 = arith.constant 0 : i32
    return %arg0, %c0_i32 : i32, i32
  }
  func.func @transform_2(%arg0: i32, %arg1: i32) -> (i32, i32) {
    %c0_i32 = arith.constant 0 : i32
    %c0_i32_0 = arith.constant 0 : i32
    return %arg0, %c0_i32 : i32, i32
  }
}

</mosaic_0001>

<llo_original>
// kernel: tpu_custom_call.1
$region0: #{tpu_custom_call.1}
  #allocation0 [shape = 'u32[]', space=smem, size = 0x4, offset = 0x4, fixed_abs, tag = 'smem constant byte address 0x4 - core index']
  #allocation1 [shape = 'u32[144,128]{1,0:T(1,128)}', space=vmem, size = 0x12000, scoped, tag = 'internal scratch']
  #allocation2 [shape = 'f32[2,8]{1,0:T(2,128)}', space=vmem, size = 0x400, scoped, tag = 'scratch operand']
  #allocation3 [shape = 'f32[2,8]{1,0:T(2,128)}', space=vmem, size = 0x400, scoped, tag = 'scratch operand']
  %s0 = inlined_call_operand.vmem [shape: f32[2,16,8], index: 0, kind: input, shape index: {}]
  %s1 = inlined_call_operand.hbm [shape: f32[2,8], index: 1, kind: output, shape index: {0}]
  %s2 = inlined_call_operand.hbm [shape: f32[2,8], index: 2, kind: output, shape index: {1}]
  %3 = xla_tuple %s1, %s2
  %s4 = sld [smem:[#allocation0]]
  $region30: #{tpu_custom_call.1} parent=0
    _
  %s6 = ssub.s32 1, %s4
  %s7 = scalar_select 0, %s6, %s4
  $region1: #{tpu_custom_call.1} parent=0
    #allocation4 [shape = 'u8[1024]{0}', space=vmem, size = 0x400, scoped, tag = 'output window, operand 0, single buffered']
    #allocation5 [shape = 's32[1]{0}', space=sflag, size = 0x4, scoped, tag = 'scoped memory for tpu_custom_call.1']
    #allocation6 [shape = 'u8[1024]{0}', space=vmem, size = 0x400, scoped, tag = 'output window, operand 1, single buffered']
    #allocation7 [shape = 's32[1]{0}', space=sflag, size = 0x4, scoped, tag = 'scoped memory for tpu_custom_call.1']
    %8 = vsyncpa [#allocation5], 0
    %9 = vsyncpa [#allocation7], 0
    // Predicated region
    $region2: #{tpu_custom_call.1} parent=1 // pred_check
      _
    $region3: #{tpu_custom_call.1} parent=1 // pred_check_branch
      %11 = sbr.rel (0) target = $region5
    $region4: #{tpu_custom_call.1} parent=1 // pred_region
      _
    $region5: #{tpu_custom_call.1} parent=1 // pred_fallthru
      _
    %p12 = scmp.eq.s32.totalorder 0, 0
    // Predicated region
    $region6: #{tpu_custom_call.1} parent=1 // pred_check
      %p13 = pneg %p12
    $region7: #{tpu_custom_call.1} parent=1 // pred_check_branch
      %15 = sbr.rel (%p13) target = $region9
    $region8: #{tpu_custom_call.1} parent=1 // pred_region
      %vm16 = vcmask 58368
      %17 = vst.msk [vmem:[#allocation2] sm:$0x3] %vm16, 0.0
      %18 = vst.msk [vmem:[#allocation3] sm:$0x3] %vm16, 0.0
    $region9: #{tpu_custom_call.1} parent=1 // pred_fallthru
      _
    %v19 = vld [vmem:[%s0] sm:$0xff]
    %v20 = vld [vmem:[%s0 + $0x8] sm:$0xff]
    %v21 = vld [vmem:[%s0 + $0x10] sm:$0xff]
    %v22 = vld [vmem:[%s0 + $0x18] sm:$0xff]
    %v23 = vld [vmem:[#allocation2] sm:$0x3]
    %vm24 = vcmask 64512
    %v25 = vsel %vm24, %v19, 0.0
    %v26 = vsel %vm24, %v20, 0.0
    %v27 = vadd.f32 %v25, %v26
    %v28 = vrot.slane %v27, 4
    %v29 = vadd.f32 %v27, %v28
    %v30 = vrot.slane %v29, 2
    %v31 = vadd.f32 %v29, %v30
    %v32 = vrot.slane %v31, 1
    %v33 = vadd.f32 %v31, %v32
    %v34 = vsel %vm24, %v21, 0.0
    %v35 = vsel %vm24, %v22, 0.0
    %v36 = vadd.f32 %v34, %v35
    %v37 = vrot.slane %v36, 4
    %v38 = vadd.f32 %v36, %v37
    %v39 = vrot.slane %v38, 2
    %v40 = vadd.f32 %v38, %v39
    %v41 = vrot.slane %v40, 1
    %v42 = vadd.f32 %v40, %v41
    %vm45 = vcmask 1041409
    %v46 = vsel %vm45, %v42, %v33
    %v48 = vadd.f32 %v23, %v46
    %vm49 = vcmask 58368
    %50 = vst.msk [vmem:[#allocation2] sm:$0x3] %vm49, %v48
    %v51 = vld [vmem:[#allocation3] sm:$0x3]
    %v52 = vmul.f32 %v19, %v19
    %v53 = vmul.f32 %v20, %v20
    %v54 = vmul.f32 %v21, %v21
    %v55 = vmul.f32 %v22, %v22
    %v56 = vsel %vm24, %v52, 0.0
    %v57 = vsel %vm24, %v53, 0.0
    %v58 = vadd.f32 %v56, %v57
    %v59 = vrot.slane %v58, 4
    %v60 = vadd.f32 %v58, %v59
    %v61 = vrot.slane %v60, 2
    %v62 = vadd.f32 %v60, %v61
    %v63 = vrot.slane %v62, 1
    %v64 = vadd.f32 %v62, %v63
    %v65 = vsel %vm24, %v54, 0.0
    %v66 = vsel %vm24, %v55, 0.0
    %v67 = vadd.f32 %v65, %v66
    %v68 = vrot.slane %v67, 4
    %v69 = vadd.f32 %v67, %v68
    %v70 = vrot.slane %v69, 2
    %v71 = vadd.f32 %v69, %v70
    %v72 = vrot.slane %v71, 1
    %v73 = vadd.f32 %v71, %v72
    %v76 = vsel %vm45, %v73, %v64
    %v78 = vadd.f32 %v51, %v76
    %79 = vst.msk [vmem:[#allocation3] sm:$0x3] %vm49, %v78
    // Predicated region
    $region10: #{tpu_custom_call.1} parent=1 // pred_check
      %p80 = pneg %p12
    $region11: #{tpu_custom_call.1} parent=1 // pred_check_branch
      %82 = sbr.rel (%p80) target = $region13
    $region12: #{tpu_custom_call.1} parent=1 // pred_region
      %v83 = vld [vmem:[#allocation2] sm:$0x3]
      %v84 = vmul.f32 %v83, 0.0625
      %v85 = vld [vmem:[#allocation3] sm:$0x3]
      %v86 = vmul.f32 %v83, %v84
      %v87 = vsub.f32 %v85, %v86
      %v88 = vrcp.pop 15.0
      %v89 = vmul.f32 %v87, %v88
      %90 = vst.msk [vmem:[#allocation4] sm:$0x3] %vm49, %v84
      %91 = vst.msk [vmem:[#allocation6] sm:$0x3] %vm49, %v89
    $region13: #{tpu_custom_call.1} parent=1 // pred_fallthru
      _
    // Predicated region
    $region14: #{tpu_custom_call.1} parent=1 // pred_check
      _
    $region15: #{tpu_custom_call.1} parent=1 // pred_check_branch
      %93 = sbr.rel (0) target = $region17
    $region16: #{tpu_custom_call.1} parent=1 // pred_region
      %s95 = ssub.s32 32, 32
      %96 = vsyncadd [#allocation5], %s95
      %s98 = sshll.u32 [#allocation4], 4
      %s99 = int_to_ptr.vmem [resolvable:$true] %s98
      %101 = dma.vmem_to_hbm [thread:$0]  %s99, 32, %s1, [#allocation5]
    $region17: #{tpu_custom_call.1} parent=1 // pred_fallthru
      _
    // Predicated region
    $region18: #{tpu_custom_call.1} parent=1 // pred_check
      _
    $region19: #{tpu_custom_call.1} parent=1 // pred_check_branch
      %103 = sbr.rel (0) target = $region21
    $region20: #{tpu_custom_call.1} parent=1 // pred_region
      %s105 = ssub.s32 32, 32
      %106 = vsyncadd [#allocation7], %s105
      %s108 = sshll.u32 [#allocation6], 4
      %s109 = int_to_ptr.vmem [resolvable:$true] %s108
      %111 = dma.vmem_to_hbm [thread:$0]  %s109, 32, %s2, [#allocation7]
    $region21: #{tpu_custom_call.1} parent=1 // pred_fallthru
      _
    // Predicated region
    $region22: #{tpu_custom_call.1} parent=1 // pred_check
      _
    $region23: #{tpu_custom_call.1} parent=1 // pred_check_branch
      %113 = sbr.rel (0) target = $region25
    $region24: #{tpu_custom_call.1} parent=1 // pred_region
      %114 = dma.done [#allocation5], 32
    $region25: #{tpu_custom_call.1} parent=1 // pred_fallthru
      _
    // Predicated region
    $region26: #{tpu_custom_call.1} parent=1 // pred_check
      _
    $region27: #{tpu_custom_call.1} parent=1 // pred_check_branch
      %116 = sbr.rel (0) target = $region29
    $region28: #{tpu_custom_call.1} parent=1 // pred_region
      %117 = dma.done [#allocation7], 32
    $region29: #{tpu_custom_call.1} parent=1 // pred_fallthru
      _
    %118 = vsyncpa [#allocation5], 1
    %119 = vsyncpa [#allocation7], 1

</llo_original>
